<compile_context>
chip_gen: v6e
topology: v6e:2x2x1
jax: 0.10.0
libtpu: 0.0.40
codegen_flags: <defaults>
</compile_context>

<pallas_src>
import functools

import jax
import jax.numpy as jnp
from jax import lax
from jax.experimental import pallas as pl
from jax.experimental.pallas import tpu as pltpu


def _mmd_tile_kernel(coef_ref, src_row_ref, tgt_row_ref, src_col_ref,
                     tgt_col_ref, out_ref, *, kernel_num, kernel_mul_int,
                     use_geometric, compute_dtype):
    """One (row-tile i, col-tile j) step of the quadrant-tiled MMD sum.

    Accumulates   sum_k sum_tile [exp_k(SS) + exp_k(TT) - 2*exp_k(ST)]
    into the per-row-tile SMEM scalar out_ref[0, 0].
    """
    j = pl.program_id(1)

    sr = src_row_ref[...]              # (Tm, D) f32, source rows of tile i
    tr = tgt_row_ref[...]              # (Tm, D) f32, target rows of tile i
    sc = src_col_ref[...]              # (Tn, D) f32, source rows of tile j
    tc = tgt_col_ref[...]              # (Tn, D) f32, target rows of tile j

    # Squared row norms, computed in f32 (exact), broadcast as (Tm,1) / (1,Tn).
    sr_sq = jnp.sum(sr * sr, axis=-1, keepdims=True)
    tr_sq = jnp.sum(tr * tr, axis=-1, keepdims=True)
    sc_sq = jnp.sum(sc * sc, axis=-1, keepdims=True).T
    tc_sq = jnp.sum(tc * tc, axis=-1, keepdims=True).T

    # Gram matrices on the MXU: (optionally) bf16 operands, f32 accumulation.
    # Contract the hidden dim of BOTH operands -> no explicit transpose/relayout.
    dn = (((1,), (1,)), ((), ()))
    sr_m = sr.astype(compute_dtype)
    tr_m = tr.astype(compute_dtype)
    sc_m = sc.astype(compute_dtype)
    tc_m = tc.astype(compute_dtype)
    g_ss = lax.dot_general(sr_m, sc_m, dn, preferred_element_type=jnp.float32)
    g_tt = lax.dot_general(tr_m, tc_m, dn, preferred_element_type=jnp.float32)
    g_st = lax.dot_general(sr_m, tc_m, dn, preferred_element_type=jnp.float32)

    # Pairwise squared distances (clamped at 0: the Gram trick can go slightly
    # negative from cancellation, e.g. on the diagonal).
    l2_ss = jnp.maximum(sr_sq + sc_sq - 2.0 * g_ss, 0.0)
    l2_tt = jnp.maximum(tr_sq + tc_sq - 2.0 * g_tt, 0.0)
    l2_st = jnp.maximum(sr_sq + tc_sq - 2.0 * g_st, 0.0)

    def multiscale_sum(l2):
        # sum over the tile of  sum_k exp(-l2 / sigma_k), folded directly into a
        # scalar -- no kval matrix is ever materialized.
        if use_geometric:
            # sigma_k = bandwidth * mul^k  =>  exp(-l2 / sigma_k) equals the exp
            # taken at the LARGEST sigma raised to mul^(K-1-k): one EUP exp per
            # element, the remaining scales are VPU multiplies.
            cur = jnp.exp(l2 * coef_ref[kernel_num - 1])
            acc = jnp.sum(cur)
            for _ in range(kernel_num - 1):
                nxt = cur
                for _ in range(kernel_mul_int - 1):
                    nxt = nxt * cur          # cur ** kernel_mul_int
                cur = nxt
                acc = acc + jnp.sum(cur)
            return acc
        acc = jnp.float32(0.0)
        for k in range(kernel_num):
            acc = acc + jnp.sum(jnp.exp(l2 * coef_ref[k]))
        return acc

    contrib = (multiscale_sum(l2_ss) + multiscale_sum(l2_tt)
               - 2.0 * multiscale_sum(l2_st))

    @pl.when(j == 0)
    def _():
        out_ref[0, 0] = jnp.float32(0.0)

    out_ref[0, 0] = out_ref[0, 0] + contrib


_TILE_CANDIDATES = (8, 16, 32, 64, 128, 256)
_VMEM_TILE_BUDGET = 8 * 1024 * 1024   # target per-step working set (bytes)


def _pick_tile(batch, hidden):
    """Largest MXU-friendly tile T that divides `batch` and fits the VMEM budget."""
    if batch % 8 != 0:
        # Fall back to one full-size block (block == full array dims is always
        # legal).  TODO(synk): pad + mask to keep tiling for batches not a
        # multiple of 8 / very large hidden dims (K-chunking).
        return batch
    best = 8
    for t in _TILE_CANDIDATES:
        # 4 f32 input tiles double-buffered + bf16 copies + ~12 TxT f32 temps.
        footprint = 8 * t * hidden * 4 + 8 * t * hidden + 12 * t * t * 4
        if batch % t == 0 and footprint <= _VMEM_TILE_BUDGET:
            best = t
    return best


def mmd_loss(source, target, kernel_mul=2.0, kernel_num=5, sigma_list=None,
             compute_dtype=jnp.bfloat16):
    """Pallas implementation of MMD_loss.forward(source, target).

    compute_dtype: dtype fed to the MXU for the Gram matrices (bf16 by default;
    pass jnp.float32 for results bit-close to a full-f32 computation).
    """
    assert source.ndim == 2 and source.shape == target.shape, (
        source.shape, target.shape)
    b, d = source.shape
    n = 2 * b

    src = source.astype(jnp.float32)
    tgt = target.astype(jnp.float32)

    if sigma_list is None:
        # sum_{i,j} ||x_i - x_j||^2 = 2n * sum_i ||x_i - mean||^2   (O(n*d)),
        # instead of a full pass over the n x n distance matrix.
        mean = (jnp.sum(src, axis=0) + jnp.sum(tgt, axis=0)) / jnp.float32(n)
        sum_l2 = 2.0 * n * (jnp.sum((src - mean) ** 2)
                            + jnp.sum((tgt - mean) ** 2))
        # NOTE: matches this module exactly (no kernel_mul**(kernel_num//2)
        # re-centering; divides by zero if all rows are identical -- same
        # behavior as the torch code).
        bandwidth = sum_l2 / jnp.float32(n * n - n)
        sigmas = [bandwidth * (float(kernel_mul) ** i)
                  for i in range(kernel_num)]
        use_geometric = float(kernel_mul).is_integer() and int(kernel_mul) >= 2
    else:
        sigmas = [jnp.asarray(s, jnp.float32) for s in sigma_list]
        kernel_num = len(sigmas)
        use_geometric = False

    # -1/sigma_k, hoisted out of the per-element work (no in-kernel divides).
    neg_inv = jnp.stack([-1.0 / s for s in sigmas]).astype(jnp.float32)

    tile = _pick_tile(b, d)
    grid_m = b // tile
    grid_n = b // tile

    kernel = functools.partial(
        _mmd_tile_kernel,
        kernel_num=kernel_num,
        kernel_mul_int=int(kernel_mul) if use_geometric else 0,
        use_geometric=use_geometric,
        compute_dtype=compute_dtype,
    )

    partials = pl.pallas_call(
        kernel,
        out_shape=jax.ShapeDtypeStruct((grid_m, 1), jnp.float32),
        grid=(grid_m, grid_n),
        in_specs=[
            pl.BlockSpec(memory_space=pltpu.MemorySpace.SMEM),        # -1/sigma_k
            pl.BlockSpec((tile, d), lambda i, j: (i, 0)),             # src row tile
            pl.BlockSpec((tile, d), lambda i, j: (i, 0)),             # tgt row tile
            pl.BlockSpec((tile, d), lambda i, j: (j, 0)),             # src col tile
            pl.BlockSpec((tile, d), lambda i, j: (j, 0)),             # tgt col tile
        ],
        out_specs=pl.BlockSpec((1, 1), lambda i, j: (i, 0),
                               memory_space=pltpu.MemorySpace.SMEM),
        compiler_params=pltpu.CompilerParams(
            dimension_semantics=("parallel", "arbitrary"),
            vmem_limit_bytes=32 * 1024 * 1024,
        ),
    )(neg_inv, src, tgt, src, tgt)

    return jnp.sum(partials) / jnp.float32(kernel_num * b * b)


def _mmd_loss_ref(source, target, kernel_mul=2.0, kernel_num=5,
                  sigma_list=None):
    """Pure-JAX reference mirroring the PyTorch broadcast-difference code."""
    b = source.shape[0]
    total = jnp.concatenate([source, target], axis=0).astype(jnp.float32)
    n = total.shape[0]
    diff = total[None, :, :] - total[:, None, :]
    l2 = jnp.sum(diff * diff, axis=2)
    if sigma_list is None:
        bandwidth = jnp.sum(l2) / (n * n - n)
        sigma_list = [bandwidth * kernel_mul ** i for i in range(kernel_num)]
    kernels = sum(jnp.exp(-l2 / s) for s in sigma_list) / len(sigma_list)
    xx = kernels[:b, :b]
    yy = kernels[b:, b:]
    xy = kernels[:b, b:]
    yx = kernels[b:, :b]
    return jnp.mean(xx + yy - xy - yx)


if __name__ == "__main__":
    key = jax.random.PRNGKey(0)
    k1, k2 = jax.random.split(key)
    batch, hidden = 8, 32
    source = jax.random.normal(k1, (batch, hidden), dtype=jnp.float32)
    target = jax.random.normal(k2, (batch, hidden), dtype=jnp.float32) + 0.5

    ref = _mmd_loss_ref(source, target, kernel_mul=2.0, kernel_num=5)

    # 1) f32 MXU path: tight check against the broadcast-difference reference.
    loss_f32 = mmd_loss(source, target, kernel_mul=2.0, kernel_num=5,
                        compute_dtype=jnp.float32)
    jax.block_until_ready(loss_f32)
    assert jnp.allclose(loss_f32, ref, rtol=5e-3, atol=5e-4), (loss_f32, ref)

    # 2) Default fast path (bf16 Gram matmul on the MXU, f32 exp/accumulate).
    #    Looser tolerance reflects only the bf16 operand rounding.
    loss_bf16 = mmd_loss(source, target, kernel_mul=2.0, kernel_num=5)
    jax.block_until_ready(loss_bf16)
    assert jnp.allclose(loss_bf16, ref, rtol=5e-2, atol=5e-3), (loss_bf16, ref)

    # 3) Explicit sigma_list path (non-geometric branch of the kernel).
    sig = [1.0, 4.0, 16.0]
    loss_sig = mmd_loss(source, target, sigma_list=sig,
                        compute_dtype=jnp.float32)
    jax.block_until_ready(loss_sig)
    ref_sig = _mmd_loss_ref(source, target, sigma_list=sig)
    assert jnp.allclose(loss_sig, ref_sig, rtol=1e-3, atol=1e-4), (loss_sig,
                                                                   ref_sig)

    print("KERNEL_OK")
</pallas_src>

<mosaic_0001>
module attributes {stable_mosaic.version = 11 : i64} {
  func.func @_mmd_tile_kernel(%arg0: i32, %arg1: i32, %arg2: memref<5xf32, #tpu.memory_space<smem>>, %arg3: memref<8x32xf32, #tpu.memory_space<vmem>>, %arg4: memref<8x32xf32, #tpu.memory_space<vmem>>, %arg5: memref<8x32xf32, #tpu.memory_space<vmem>>, %arg6: memref<8x32xf32, #tpu.memory_space<vmem>>, %arg7: memref<1x1xf32, #tpu.memory_space<smem>>) attributes {dimension_semantics = [#tpu.dimension_semantics<parallel>, #tpu.dimension_semantics<arbitrary>], iteration_bounds = array<i64: 1, 1>, scalar_prefetch = 0 : i64, scratch_operands = 0 : i64, tpu.core_type = #tpu.core_type<tc>, window_params = [{transform_indices = @transform_0, window_bounds = array<i64: 5>}, {transform_indices = @transform_1, window_bounds = array<i64: 8, 32>}, {transform_indices = @transform_2, window_bounds = array<i64: 8, 32>}, {transform_indices = @transform_3, window_bounds = array<i64: 8, 32>}, {transform_indices = @transform_4, window_bounds = array<i64: 8, 32>}, {transform_indices = @transform_5, window_bounds = array<i64: 1, 1>}]} {
    %c0 = arith.constant 0 : index
    %c0_0 = arith.constant 0 : index
    %0 = vector.load %arg3[%c0, %c0_0] : memref<8x32xf32, #tpu.memory_space<vmem>>, vector<8x32xf32>
    %c0_1 = arith.constant 0 : index
    %c0_2 = arith.constant 0 : index
    %1 = vector.load %arg4[%c0_1, %c0_2] : memref<8x32xf32, #tpu.memory_space<vmem>>, vector<8x32xf32>
    %c0_3 = arith.constant 0 : index
    %c0_4 = arith.constant 0 : index
    %2 = vector.load %arg5[%c0_3, %c0_4] : memref<8x32xf32, #tpu.memory_space<vmem>>, vector<8x32xf32>
    %c0_5 = arith.constant 0 : index
    %c0_6 = arith.constant 0 : index
    %3 = vector.load %arg6[%c0_5, %c0_6] : memref<8x32xf32, #tpu.memory_space<vmem>>, vector<8x32xf32>
    %4 = arith.mulf %0, %0 : vector<8x32xf32>
    %cst = arith.constant dense<0.000000e+00> : vector<8xf32>
    %5 = vector.multi_reduction <add>, %4, %cst [1] : vector<8x32xf32> to vector<8xf32>
    %6 = vector.shape_cast %5 : vector<8xf32> to vector<8x1xf32>
    %7 = arith.mulf %1, %1 : vector<8x32xf32>
    %cst_7 = arith.constant dense<0.000000e+00> : vector<8xf32>
    %8 = vector.multi_reduction <add>, %7, %cst_7 [1] : vector<8x32xf32> to vector<8xf32>
    %9 = vector.shape_cast %8 : vector<8xf32> to vector<8x1xf32>
    %10 = arith.mulf %2, %2 : vector<8x32xf32>
    %cst_8 = arith.constant dense<0.000000e+00> : vector<8xf32>
    %11 = vector.multi_reduction <add>, %10, %cst_8 [1] : vector<8x32xf32> to vector<8xf32>
    %12 = vector.shape_cast %11 : vector<8xf32> to vector<8x1xf32>
    %13 = tpu.transpose %12, [1, 0] : vector<8x1xf32> -> vector<1x8xf32>
    %14 = arith.mulf %3, %3 : vector<8x32xf32>
    %cst_9 = arith.constant dense<0.000000e+00> : vector<8xf32>
    %15 = vector.multi_reduction <add>, %14, %cst_9 [1] : vector<8x32xf32> to vector<8xf32>
    %16 = vector.shape_cast %15 : vector<8xf32> to vector<8x1xf32>
    %17 = tpu.transpose %16, [1, 0] : vector<8x1xf32> -> vector<1x8xf32>
    %cst_10 = arith.constant dense<0.000000e+00> : vector<8x8xf32>
    %18 = tpu.matmul %0, %2, %cst_10 {dimension_numbers = #tpu.dot_dimension_numbers<[1], [1], [0], [0], [0, 0, 1, 0], [], []>} : vector<8x32xf32>, vector<8x32xf32>, vector<8x8xf32> -> vector<8x8xf32>
    %cst_11 = arith.constant dense<0.000000e+00> : vector<8x8xf32>
    %19 = tpu.matmul %1, %3, %cst_11 {dimension_numbers = #tpu.dot_dimension_numbers<[1], [1], [0], [0], [0, 0, 1, 0], [], []>} : vector<8x32xf32>, vector<8x32xf32>, vector<8x8xf32> -> vector<8x8xf32>
    %cst_12 = arith.constant dense<0.000000e+00> : vector<8x8xf32>
    %20 = tpu.matmul %0, %3, %cst_12 {dimension_numbers = #tpu.dot_dimension_numbers<[1], [1], [0], [0], [0, 0, 1, 0], [], []>} : vector<8x32xf32>, vector<8x32xf32>, vector<8x8xf32> -> vector<8x8xf32>
    %21 = vector.broadcast %6 : vector<8x1xf32> to vector<8x8xf32>
    %22 = vector.broadcast %13 : vector<1x8xf32> to vector<8x8xf32>
    %23 = arith.addf %21, %22 : vector<8x8xf32>
    %cst_13 = arith.constant 2.000000e+00 : f32
    %24 = vector.broadcast %cst_13 : f32 to vector<8x8xf32>
    %25 = arith.mulf %24, %18 : vector<8x8xf32>
    %26 = arith.subf %23, %25 : vector<8x8xf32>
    %cst_14 = arith.constant 0.000000e+00 : f32
    %27 = vector.broadcast %cst_14 : f32 to vector<8x8xf32>
    %28 = arith.maximumf %26, %27 : vector<8x8xf32>
    %29 = vector.broadcast %9 : vector<8x1xf32> to vector<8x8xf32>
    %30 = vector.broadcast %17 : vector<1x8xf32> to vector<8x8xf32>
    %31 = arith.addf %29, %30 : vector<8x8xf32>
    %cst_15 = arith.constant 2.000000e+00 : f32
    %32 = vector.broadcast %cst_15 : f32 to vector<8x8xf32>
    %33 = arith.mulf %32, %19 : vector<8x8xf32>
    %34 = arith.subf %31, %33 : vector<8x8xf32>
    %cst_16 = arith.constant 0.000000e+00 : f32
    %35 = vector.broadcast %cst_16 : f32 to vector<8x8xf32>
    %36 = arith.maximumf %34, %35 : vector<8x8xf32>
    %37 = vector.broadcast %6 : vector<8x1xf32> to vector<8x8xf32>
    %38 = vector.broadcast %17 : vector<1x8xf32> to vector<8x8xf32>
    %39 = arith.addf %37, %38 : vector<8x8xf32>
    %cst_17 = arith.constant 2.000000e+00 : f32
    %40 = vector.broadcast %cst_17 : f32 to vector<8x8xf32>
    %41 = arith.mulf %40, %20 : vector<8x8xf32>
    %42 = arith.subf %39, %41 : vector<8x8xf32>
    %cst_18 = arith.constant 0.000000e+00 : f32
    %43 = vector.broadcast %cst_18 : f32 to vector<8x8xf32>
    %44 = arith.maximumf %42, %43 : vector<8x8xf32>
    %c4 = arith.constant 4 : index
    %45 = memref.load %arg2[%c4] : memref<5xf32, #tpu.memory_space<smem>>
    %46 = vector.broadcast %45 : f32 to vector<8x8xf32>
    %47 = arith.mulf %28, %46 : vector<8x8xf32>
    %48 = math.exp %47 : vector<8x8xf32>
    %49 = vector.shape_cast %48 : vector<8x8xf32> to vector<1x8x8xf32>
    %cst_19 = arith.constant dense<0.000000e+00> : vector<1xf32>
    %50 = vector.multi_reduction <add>, %49, %cst_19 [1, 2] : vector<1x8x8xf32> to vector<1xf32>
    %51 = vector.shape_cast %50 : vector<1xf32> to vector<1x1x1xf32>
    %52 = vector.extract %51[0, 0, 0] : f32 from vector<1x1x1xf32>
    %53 = arith.mulf %48, %48 : vector<8x8xf32>
    %54 = vector.shape_cast %53 : vector<8x8xf32> to vector<1x8x8xf32>
    %cst_20 = arith.constant dense<0.000000e+00> : vector<1xf32>
    %55 = vector.multi_reduction <add>, %54, %cst_20 [1, 2] : vector<1x8x8xf32> to vector<1xf32>
    %56 = vector.shape_cast %55 : vector<1xf32> to vector<1x1x1xf32>
    %57 = vector.extract %56[0, 0, 0] : f32 from vector<1x1x1xf32>
    %58 = arith.addf %52, %57 : f32
    %59 = arith.mulf %53, %53 : vector<8x8xf32>
    %60 = vector.shape_cast %59 : vector<8x8xf32> to vector<1x8x8xf32>
    %cst_21 = arith.constant dense<0.000000e+00> : vector<1xf32>
    %61 = vector.multi_reduction <add>, %60, %cst_21 [1, 2] : vector<1x8x8xf32> to vector<1xf32>
    %62 = vector.shape_cast %61 : vector<1xf32> to vector<1x1x1xf32>
    %63 = vector.extract %62[0, 0, 0] : f32 from vector<1x1x1xf32>
    %64 = arith.addf %58, %63 : f32
    %65 = arith.mulf %59, %59 : vector<8x8xf32>
    %66 = vector.shape_cast %65 : vector<8x8xf32> to vector<1x8x8xf32>
    %cst_22 = arith.constant dense<0.000000e+00> : vector<1xf32>
    %67 = vector.multi_reduction <add>, %66, %cst_22 [1, 2] : vector<1x8x8xf32> to vector<1xf32>
    %68 = vector.shape_cast %67 : vector<1xf32> to vector<1x1x1xf32>
    %69 = vector.extract %68[0, 0, 0] : f32 from vector<1x1x1xf32>
    %70 = arith.addf %64, %69 : f32
    %71 = arith.mulf %65, %65 : vector<8x8xf32>
    %72 = vector.shape_cast %71 : vector<8x8xf32> to vector<1x8x8xf32>
    %cst_23 = arith.constant dense<0.000000e+00> : vector<1xf32>
    %73 = vector.multi_reduction <add>, %72, %cst_23 [1, 2] : vector<1x8x8xf32> to vector<1xf32>
    %74 = vector.shape_cast %73 : vector<1xf32> to vector<1x1x1xf32>
    %75 = vector.extract %74[0, 0, 0] : f32 from vector<1x1x1xf32>
    %76 = arith.addf %70, %75 : f32
    %c4_24 = arith.constant 4 : index
    %77 = memref.load %arg2[%c4_24] : memref<5xf32, #tpu.memory_space<smem>>
    %78 = vector.broadcast %77 : f32 to vector<8x8xf32>
    %79 = arith.mulf %36, %78 : vector<8x8xf32>
    %80 = math.exp %79 : vector<8x8xf32>
    %81 = vector.shape_cast %80 : vector<8x8xf32> to vector<1x8x8xf32>
    %cst_25 = arith.constant dense<0.000000e+00> : vector<1xf32>
    %82 = vector.multi_reduction <add>, %81, %cst_25 [1, 2] : vector<1x8x8xf32> to vector<1xf32>
    %83 = vector.shape_cast %82 : vector<1xf32> to vector<1x1x1xf32>
    %84 = vector.extract %83[0, 0, 0] : f32 from vector<1x1x1xf32>
    %85 = arith.mulf %80, %80 : vector<8x8xf32>
    %86 = vector.shape_cast %85 : vector<8x8xf32> to vector<1x8x8xf32>
    %cst_26 = arith.constant dense<0.000000e+00> : vector<1xf32>
    %87 = vector.multi_reduction <add>, %86, %cst_26 [1, 2] : vector<1x8x8xf32> to vector<1xf32>
    %88 = vector.shape_cast %87 : vector<1xf32> to vector<1x1x1xf32>
    %89 = vector.extract %88[0, 0, 0] : f32 from vector<1x1x1xf32>
    %90 = arith.addf %84, %89 : f32
    %91 = arith.mulf %85, %85 : vector<8x8xf32>
    %92 = vector.shape_cast %91 : vector<8x8xf32> to vector<1x8x8xf32>
    %cst_27 = arith.constant dense<0.000000e+00> : vector<1xf32>
    %93 = vector.multi_reduction <add>, %92, %cst_27 [1, 2] : vector<1x8x8xf32> to vector<1xf32>
    %94 = vector.shape_cast %93 : vector<1xf32> to vector<1x1x1xf32>
    %95 = vector.extract %94[0, 0, 0] : f32 from vector<1x1x1xf32>
    %96 = arith.addf %90, %95 : f32
    %97 = arith.mulf %91, %91 : vector<8x8xf32>
    %98 = vector.shape_cast %97 : vector<8x8xf32> to vector<1x8x8xf32>
    %cst_28 = arith.constant dense<0.000000e+00> : vector<1xf32>
    %99 = vector.multi_reduction <add>, %98, %cst_28 [1, 2] : vector<1x8x8xf32> to vector<1xf32>
    %100 = vector.shape_cast %99 : vector<1xf32> to vector<1x1x1xf32>
    %101 = vector.extract %100[0, 0, 0] : f32 from vector<1x1x1xf32>
    %102 = arith.addf %96, %101 : f32
    %103 = arith.mulf %97, %97 : vector<8x8xf32>
    %104 = vector.shape_cast %103 : vector<8x8xf32> to vector<1x8x8xf32>
    %cst_29 = arith.constant dense<0.000000e+00> : vector<1xf32>
    %105 = vector.multi_reduction <add>, %104, %cst_29 [1, 2] : vector<1x8x8xf32> to vector<1xf32>
    %106 = vector.shape_cast %105 : vector<1xf32> to vector<1x1x1xf32>
    %107 = vector.extract %106[0, 0, 0] : f32 from vector<1x1x1xf32>
    %108 = arith.addf %102, %107 : f32
    %109 = arith.addf %76, %108 : f32
    %c4_30 = arith.constant 4 : index
    %110 = memref.load %arg2[%c4_30] : memref<5xf32, #tpu.memory_space<smem>>
    %111 = vector.broadcast %110 : f32 to vector<8x8xf32>
    %112 = arith.mulf %44, %111 : vector<8x8xf32>
    %113 = math.exp %112 : vector<8x8xf32>
    %114 = vector.shape_cast %113 : vector<8x8xf32> to vector<1x8x8xf32>
    %cst_31 = arith.constant dense<0.000000e+00> : vector<1xf32>
    %115 = vector.multi_reduction <add>, %114, %cst_31 [1, 2] : vector<1x8x8xf32> to vector<1xf32>
    %116 = vector.shape_cast %115 : vector<1xf32> to vector<1x1x1xf32>
    %117 = vector.extract %116[0, 0, 0] : f32 from vector<1x1x1xf32>
    %118 = arith.mulf %113, %113 : vector<8x8xf32>
    %119 = vector.shape_cast %118 : vector<8x8xf32> to vector<1x8x8xf32>
    %cst_32 = arith.constant dense<0.000000e+00> : vector<1xf32>
    %120 = vector.multi_reduction <add>, %119, %cst_32 [1, 2] : vector<1x8x8xf32> to vector<1xf32>
    %121 = vector.shape_cast %120 : vector<1xf32> to vector<1x1x1xf32>
    %122 = vector.extract %121[0, 0, 0] : f32 from vector<1x1x1xf32>
    %123 = arith.addf %117, %122 : f32
    %124 = arith.mulf %118, %118 : vector<8x8xf32>
    %125 = vector.shape_cast %124 : vector<8x8xf32> to vector<1x8x8xf32>
    %cst_33 = arith.constant dense<0.000000e+00> : vector<1xf32>
    %126 = vector.multi_reduction <add>, %125, %cst_33 [1, 2] : vector<1x8x8xf32> to vector<1xf32>
    %127 = vector.shape_cast %126 : vector<1xf32> to vector<1x1x1xf32>
    %128 = vector.extract %127[0, 0, 0] : f32 from vector<1x1x1xf32>
    %129 = arith.addf %123, %128 : f32
    %130 = arith.mulf %124, %124 : vector<8x8xf32>
    %131 = vector.shape_cast %130 : vector<8x8xf32> to vector<1x8x8xf32>
    %cst_34 = arith.constant dense<0.000000e+00> : vector<1xf32>
    %132 = vector.multi_reduction <add>, %131, %cst_34 [1, 2] : vector<1x8x8xf32> to vector<1xf32>
    %133 = vector.shape_cast %132 : vector<1xf32> to vector<1x1x1xf32>
    %134 = vector.extract %133[0, 0, 0] : f32 from vector<1x1x1xf32>
    %135 = arith.addf %129, %134 : f32
    %136 = arith.mulf %130, %130 : vector<8x8xf32>
    %137 = vector.shape_cast %136 : vector<8x8xf32> to vector<1x8x8xf32>
    %cst_35 = arith.constant dense<0.000000e+00> : vector<1xf32>
    %138 = vector.multi_reduction <add>, %137, %cst_35 [1, 2] : vector<1x8x8xf32> to vector<1xf32>
    %139 = vector.shape_cast %138 : vector<1xf32> to vector<1x1x1xf32>
    %140 = vector.extract %139[0, 0, 0] : f32 from vector<1x1x1xf32>
    %141 = arith.addf %135, %140 : f32
    %cst_36 = arith.constant 2.000000e+00 : f32
    %142 = arith.mulf %cst_36, %141 : f32
    %143 = arith.subf %109, %142 : f32
    %c0_i32 = arith.constant 0 : i32
    %144 = arith.cmpi eq, %arg1, %c0_i32 : i32
    %145 = arith.extui %144 : i1 to i32
    %c0_i32_37 = arith.constant 0 : i32
    %146 = arith.cmpi ne, %145, %c0_i32_37 : i32
    scf.if %146 {
      %cst_42 = arith.constant 0.000000e+00 : f32
      %c0_43 = arith.constant 0 : index
      %c0_44 = arith.constant 0 : index
      %150 = memref.load %arg7[%c0_43, %c0_44] : memref<1x1xf32, #tpu.memory_space<smem>>
      memref.store %cst_42, %arg7[%c0_43, %c0_44] : memref<1x1xf32, #tpu.memory_space<smem>>
    } else {
    }
    %c0_38 = arith.constant 0 : index
    %c0_39 = arith.constant 0 : index
    %147 = memref.load %arg7[%c0_38, %c0_39] : memref<1x1xf32, #tpu.memory_space<smem>>
    %148 = arith.addf %147, %143 : f32
    %c0_40 = arith.constant 0 : index
    %c0_41 = arith.constant 0 : index
    %149 = memref.load %arg7[%c0_40, %c0_41] : memref<1x1xf32, #tpu.memory_space<smem>>
    memref.store %148, %arg7[%c0_40, %c0_41] : memref<1x1xf32, #tpu.memory_space<smem>>
    return
  }
  func.func @transform_0(%arg0: i32, %arg1: i32) -> i32 {
    %c0_i32 = arith.constant 0 : i32
    %c0_i32_0 = arith.constant 0 : i32
    return %c0_i32 : i32
  }
  func.func @transform_1(%arg0: i32, %arg1: i32) -> (i32, i32) {
    %c0_i32 = arith.constant 0 : i32
    %c0_i32_0 = arith.constant 0 : i32
    return %arg0, %c0_i32 : i32, i32
  }
  func.func @transform_2(%arg0: i32, %arg1: i32) -> (i32, i32) {
    %c0_i32 = arith.constant 0 : i32
    %c0_i32_0 = arith.constant 0 : i32
    return %arg0, %c0_i32 : i32, i32
  }
  func.func @transform_3(%arg0: i32, %arg1: i32) -> (i32, i32) {
    %c0_i32 = arith.constant 0 : i32
    %c0_i32_0 = arith.constant 0 : i32
    return %arg1, %c0_i32 : i32, i32
  }
  func.func @transform_4(%arg0: i32, %arg1: i32) -> (i32, i32) {
    %c0_i32 = arith.constant 0 : i32
    %c0_i32_0 = arith.constant 0 : i32
    return %arg1, %c0_i32 : i32, i32
  }
  func.func @transform_5(%arg0: i32, %arg1: i32) -> (i32, i32) {
    %c0_i32 = arith.constant 0 : i32
    %c0_i32_0 = arith.constant 0 : i32
    return %arg0, %c0_i32 : i32, i32
  }
}

</mosaic_0001>

<llo_original>
// kernel: tpu_custom_call.1
$region0: #{tpu_custom_call.1}
  #allocation0 [shape = 'u32[]', space=smem, size = 0x4, offset = 0x4, fixed_abs, tag = 'smem constant byte address 0x4 - core index']
  #allocation1 [shape = 'u32[144,128]{1,0:T(1,128)}', space=vmem, size = 0x12000, scoped, tag = 'internal scratch']
  %s0 = inlined_call_operand.hbm [shape: f32[5], index: 0, kind: input, shape index: {}]
  %s1 = inlined_call_operand.hbm [shape: f32[8,32], index: 1, kind: input, shape index: {}]
  %s2 = inlined_call_operand.hbm [shape: f32[8,32], index: 2, kind: input, shape index: {}]
  %s3 = inlined_call_operand.hbm [shape: f32[8,32], index: 3, kind: input, shape index: {}]
  %s4 = inlined_call_operand.hbm [shape: f32[8,32], index: 4, kind: input, shape index: {}]
  %s5 = inlined_call_operand.hbm [shape: f32[1,1], index: 5, kind: output, shape index: {}]
  %s6 = sld [smem:[#allocation0]]
  $region54: #{tpu_custom_call.1} parent=0
    _
  %s8 = ssub.s32 1, %s6
  %s9 = scalar_select 0, %s8, %s6
  $region1: #{tpu_custom_call.1} parent=0
    #allocation2 [shape = 'u8[512]{0}', space=smem, size = 0x200, scoped, tag = 'input window, operand 0, single buffered']
    #allocation3 [shape = 's32[1]{0}', space=sflag, size = 0x4, scoped, tag = 'scoped memory for tpu_custom_call.1']
    #allocation4 [shape = 's32[1]{0}', space=sflag, size = 0x4, scoped, tag = 'scoped memory for tpu_custom_call.1']
    #allocation5 [shape = 's32[1]{0}', space=sflag, size = 0x4, scoped, tag = 'scoped memory for tpu_custom_call.1']
    #allocation6 [shape = 'u8[4096]{0}', space=vmem, size = 0x1000, scoped, tag = 'input window, operand 1, single buffered']
    #allocation7 [shape = 'u8[4096]{0}', space=vmem, size = 0x1000, scoped, tag = 'input window, operand 2, single buffered']
    #allocation8 [shape = 's32[1]{0}', space=sflag, size = 0x4, scoped, tag = 'scoped memory for tpu_custom_call.1']
    #allocation9 [shape = 'u8[4096]{0}', space=vmem, size = 0x1000, scoped, tag = 'input window, operand 3, single buffered']
    #allocation10 [shape = 'u8[4096]{0}', space=vmem, size = 0x1000, scoped, tag = 'input window, operand 4, single buffered']
    #allocation11 [shape = 's32[1]{0}', space=sflag, size = 0x4, scoped, tag = 'scoped memory for tpu_custom_call.1']
    #allocation12 [shape = 'u8[512]{0}', space=smem, size = 0x200, scoped, tag = 'output window, operand 0, single buffered']
    %10 = vsyncpa [#allocation4], 0
    %11 = vsyncpa [#allocation3], 0
    %12 = vsyncpa [#allocation8], 0
    %13 = vsyncpa [#allocation11], 0
    %14 = vsyncpa [#allocation5], 0
    // Predicated region
    $region2: #{tpu_custom_call.1} parent=1 // pred_check
      _
    $region3: #{tpu_custom_call.1} parent=1 // pred_check_branch
      %16 = sbr.rel (0) target = $region5
    $region4: #{tpu_custom_call.1} parent=1 // pred_region
      %s18 = ssub.s32 16, 16
      %19 = vsyncadd [#allocation4], %s18
      %22 = dma.hbm_to_smem %s0, 16, [#allocation2], [#allocation4]
    $region5: #{tpu_custom_call.1} parent=1 // pred_fallthru
      _
    // Predicated region
    $region6: #{tpu_custom_call.1} parent=1 // pred_check
      _
    $region7: #{tpu_custom_call.1} parent=1 // pred_check_branch
      %24 = sbr.rel (0) target = $region9
    $region8: #{tpu_custom_call.1} parent=1 // pred_region
      %s26 = ssub.s32 128, 128
      %27 = vsyncadd [#allocation3], %s26
      %s29 = sshll.u32 [#allocation6], 4
      %s30 = int_to_ptr.vmem [resolvable:$true] %s29
      %32 = dma.hbm_to_vmem [thread:$0]  %s1, 128, %s30, [#allocation3]
    $region9: #{tpu_custom_call.1} parent=1 // pred_fallthru
      _
    // Predicated region
    $region10: #{tpu_custom_call.1} parent=1 // pred_check
      _
    $region11: #{tpu_custom_call.1} parent=1 // pred_check_branch
      %34 = sbr.rel (0) target = $region13
    $region12: #{tpu_custom_call.1} parent=1 // pred_region
      %s36 = ssub.s32 128, 128
      %37 = vsyncadd [#allocation8], %s36
      %s39 = sshll.u32 [#allocation7], 4
      %s40 = int_to_ptr.vmem [resolvable:$true] %s39
      %42 = dma.hbm_to_vmem [thread:$0]  %s2, 128, %s40, [#allocation8]
    $region13: #{tpu_custom_call.1} parent=1 // pred_fallthru
      _
    // Predicated region
    $region14: #{tpu_custom_call.1} parent=1 // pred_check
      _
    $region15: #{tpu_custom_call.1} parent=1 // pred_check_branch
      %44 = sbr.rel (0) target = $region17
    $region16: #{tpu_custom_call.1} parent=1 // pred_region
      %s46 = ssub.s32 128, 128
      %47 = vsyncadd [#allocation8], %s46
      %s49 = sshll.u32 [#allocation9], 4
      %s50 = int_to_ptr.vmem [resolvable:$true] %s49
      %52 = dma.hbm_to_vmem [thread:$0]  %s3, 128, %s50, [#allocation8]
    $region17: #{tpu_custom_call.1} parent=1 // pred_fallthru
      _
    // Predicated region
    $region18: #{tpu_custom_call.1} parent=1 // pred_check
      _
    $region19: #{tpu_custom_call.1} parent=1 // pred_check_branch
      %54 = sbr.rel (0) target = $region21
    $region20: #{tpu_custom_call.1} parent=1 // pred_region
      %s56 = ssub.s32 128, 128
      %57 = vsyncadd [#allocation11], %s56
      %s59 = sshll.u32 [#allocation10], 4
      %s60 = int_to_ptr.vmem [resolvable:$true] %s59
      %62 = dma.hbm_to_vmem [thread:$0]  %s4, 128, %s60, [#allocation11]
    $region21: #{tpu_custom_call.1} parent=1 // pred_fallthru
      _
    // Predicated region
    $region22: #{tpu_custom_call.1} parent=1 // pred_check
      _
    $region23: #{tpu_custom_call.1} parent=1 // pred_check_branch
      %64 = sbr.rel (0) target = $region25
    $region24: #{tpu_custom_call.1} parent=1 // pred_region
      %65 = dma.done [#allocation4], 16
    $region25: #{tpu_custom_call.1} parent=1 // pred_fallthru
      _
    // Predicated region
    $region26: #{tpu_custom_call.1} parent=1 // pred_check
      _
    $region27: #{tpu_custom_call.1} parent=1 // pred_check_branch
      %67 = sbr.rel (0) target = $region29
    $region28: #{tpu_custom_call.1} parent=1 // pred_region
      %68 = dma.done [#allocation3], 128
    $region29: #{tpu_custom_call.1} parent=1 // pred_fallthru
      _
    // Predicated region
    $region30: #{tpu_custom_call.1} parent=1 // pred_check
      _
    $region31: #{tpu_custom_call.1} parent=1 // pred_check_branch
      %70 = sbr.rel (0) target = $region33
    $region32: #{tpu_custom_call.1} parent=1 // pred_region
      %71 = dma.done [#allocation8], 128
    $region33: #{tpu_custom_call.1} parent=1 // pred_fallthru
      _
    // Predicated region
    $region34: #{tpu_custom_call.1} parent=1 // pred_check
      _
    $region35: #{tpu_custom_call.1} parent=1 // pred_check_branch
      %73 = sbr.rel (0) target = $region37
    $region36: #{tpu_custom_call.1} parent=1 // pred_region
      %74 = dma.done [#allocation8], 128
    $region37: #{tpu_custom_call.1} parent=1 // pred_fallthru
      _
    // Predicated region
    $region38: #{tpu_custom_call.1} parent=1 // pred_check
      _
    $region39: #{tpu_custom_call.1} parent=1 // pred_check_branch
      %76 = sbr.rel (0) target = $region41
    $region40: #{tpu_custom_call.1} parent=1 // pred_region
      %77 = dma.done [#allocation11], 128
    $region41: #{tpu_custom_call.1} parent=1 // pred_fallthru
      _
    %78 = sfence
    %v79 = vld [vmem:[#allocation6] sm:$0xff]
    %v80 = vld [vmem:[#allocation7] sm:$0xff]
    %v81 = vld [vmem:[#allocation9] sm:$0xff]
    %v82 = vld [vmem:[#allocation10] sm:$0xff]
    %v83 = vmul.f32 %v79, %v79
    %vm84 = vcmask 261120
    %v85 = vsel %vm84, %v83, 0.0
    %86 = vadd.xlane.f32.xlu0 %v85
    %v87 = vpop.xlane.xlu0 %86
    %v88 = vmul.f32 %v80, %v80
    %v89 = vsel %vm84, %v88, 0.0
    %90 = vadd.xlane.f32.xlu0 %v89
    %v91 = vpop.xlane.xlu0 %90
    %v92 = vmul.f32 %v81, %v81
    %v93 = vsel %vm84, %v92, 0.0
    %94 = vadd.xlane.f32.xlu0 %v93
    %v95 = vpop.xlane.xlu0 %94
    %96 = vxpose.xlu0.b32.start [1/16] %v95, 128
    %97 = vxpose.xlu0.b32.cont [2/16] 0.0, 128
    %98 = vxpose.xlu0.b32.cont [3/16] 0.0, 128
    %99 = vxpose.xlu0.b32.cont [4/16] 0.0, 128
    %100 = vxpose.xlu0.b32.cont [5/16] 0.0, 128
    %101 = vxpose.xlu0.b32.cont [6/16] 0.0, 128
    %102 = vxpose.xlu0.b32.cont [7/16] 0.0, 128
    %103 = vxpose.xlu0.b32.cont [8/16] 0.0, 128
    %104 = vxpose.xlu0.b32.cont [9/16] 0.0, 128
    %105 = vxpose.xlu0.b32.cont [10/16] 0.0, 128
    %106 = vxpose.xlu0.b32.cont [11/16] 0.0, 128
    %107 = vxpose.xlu0.b32.cont [12/16] 0.0, 128
    %108 = vxpose.xlu0.b32.cont [13/16] 0.0, 128
    %109 = vxpose.xlu0.b32.cont [14/16] 0.0, 128
    %110 = vxpose.xlu0.b32.cont [15/16] 0.0, 128
    %111 = vxpose.xlu0.b32.end [16/16] 0.0, 128
    %v112 = vpop.trf.xlu0
    %v113 = vpop.trf.xlu0
    %v114 = vpop.trf.xlu0
    %v115 = vpop.trf.xlu0
    %v116 = vpop.trf.xlu0
    %v117 = vpop.trf.xlu0
    %v118 = vpop.trf.xlu0
    %v119 = vpop.trf.xlu0
    %v120 = vpop.trf.xlu0
    %v121 = vpop.trf.xlu0
    %v122 = vpop.trf.xlu0
    %v123 = vpop.trf.xlu0
    %v124 = vpop.trf.xlu0
    %v125 = vpop.trf.xlu0
    %v126 = vpop.trf.xlu0
    %v127 = vpop.trf.xlu0
    %v128 = vmul.f32 %v82, %v82
    %v129 = vsel %vm84, %v128, 0.0
    %130 = vadd.xlane.f32.xlu0 %v129
    %v131 = vpop.xlane.xlu0 %130
    %132 = vxpose.xlu0.b32.start [1/16] %v131, 128
    %133 = vxpose.xlu0.b32.cont [2/16] 0.0, 128
    %134 = vxpose.xlu0.b32.cont [3/16] 0.0, 128
    %135 = vxpose.xlu0.b32.cont [4/16] 0.0, 128
    %136 = vxpose.xlu0.b32.cont [5/16] 0.0, 128
    %137 = vxpose.xlu0.b32.cont [6/16] 0.0, 128
    %138 = vxpose.xlu0.b32.cont [7/16] 0.0, 128
    %139 = vxpose.xlu0.b32.cont [8/16] 0.0, 128
    %140 = vxpose.xlu0.b32.cont [9/16] 0.0, 128
    %141 = vxpose.xlu0.b32.cont [10/16] 0.0, 128
    %142 = vxpose.xlu0.b32.cont [11/16] 0.0, 128
    %143 = vxpose.xlu0.b32.cont [12/16] 0.0, 128
    %144 = vxpose.xlu0.b32.cont [13/16] 0.0, 128
    %145 = vxpose.xlu0.b32.cont [14/16] 0.0, 128
    %146 = vxpose.xlu0.b32.cont [15/16] 0.0, 128
    %147 = vxpose.xlu0.b32.end [16/16] 0.0, 128
    %v148 = vpop.trf.xlu0
    %v149 = vpop.trf.xlu0
    %v150 = vpop.trf.xlu0
    %v151 = vpop.trf.xlu0
    %v152 = vpop.trf.xlu0
    %v153 = vpop.trf.xlu0
    %v154 = vpop.trf.xlu0
    %v155 = vpop.trf.xlu0
    %v156 = vpop.trf.xlu0
    %v157 = vpop.trf.xlu0
    %v158 = vpop.trf.xlu0
    %v159 = vpop.trf.xlu0
    %v160 = vpop.trf.xlu0
    %v161 = vpop.trf.xlu0
    %v162 = vpop.trf.xlu0
    %v163 = vpop.trf.xlu0
    %v165 = vsel %vm84, %v79, 0
    %v168 = vsel %vm84, %v81, 0
    %170 = vmatprep.subr.mxu0 0.0
    %171 = vmatpush1.xpose.msra.mxu0 0.0
    %172 = vmatprep.subr.mxu0 0.0
    %173 = vmatpush1.xpose.msra.mxu0 0.0
    %174 = vmatprep.subr.mxu0 0.0
    %175 = vmatpush1.xpose.msra.mxu0 0.0
    %176 = vmatprep.subr.mxu0 0.0
    %177 = vmatpush1.xpose.msra.mxu0 0.0
    %178 = vmatprep.subr.mxu0 0.0
    %179 = vmatpush1.xpose.msra.mxu0 0.0
    %180 = vmatprep.subr.mxu0 0.0
    %181 = vmatpush1.xpose.msra.mxu0 0.0
    %182 = vmatprep.subr.mxu0 0.0
    %183 = vmatpush1.xpose.msra.mxu0 0.0
    %184 = vmatprep.subr.mxu0 0.0
    %185 = vmatpush1.xpose.msra.mxu0 0.0
    %186 = vmatprep.subr.mxu0 0.0
    %187 = vmatpush1.xpose.msra.mxu0 0.0
    %188 = vmatprep.subr.mxu0 0.0
    %189 = vmatpush1.xpose.msra.mxu0 0.0
    %190 = vmatprep.subr.mxu0 0.0
    %191 = vmatpush1.xpose.msra.mxu0 0.0
    %192 = vmatprep.subr.mxu0 0.0
    %193 = vmatpush1.xpose.msra.mxu0 0.0
    %194 = vmatprep.subr.mxu0 0.0
    %195 = vmatpush1.xpose.msra.mxu0 0.0
    %196 = vmatprep.subr.mxu0 0.0
    %197 = vmatpush1.xpose.msra.mxu0 0.0
    %198 = vmatprep.subr.mxu0 0.0
    %199 = vmatpush1.xpose.msra.mxu0 0.0
    %200 = vmatprep.subr.mxu0 0.0
    %201 = vmatpush1.xpose.msra.mxu0 %v168
    %202 = vmatprep.subr.mxu0 0.0
    %203 = vmatpush2.xpose.msra.mxu0 0.0
    %204 = vmatprep.subr.mxu0 0.0
    %205 = vmatpush2.xpose.msra.mxu0 0.0
    %206 = vmatprep.subr.mxu0 0.0
    %207 = vmatpush2.xpose.msra.mxu0 0.0
    %208 = vmatprep.subr.mxu0 0.0
    %209 = vmatpush2.xpose.msra.mxu0 0.0
    %210 = vmatprep.subr.mxu0 0.0
    %211 = vmatpush2.xpose.msra.mxu0 0.0
    %212 = vmatprep.subr.mxu0 0.0
    %213 = vmatpush2.xpose.msra.mxu0 0.0
    %214 = vmatprep.subr.mxu0 0.0
    %215 = vmatpush2.xpose.msra.mxu0 0.0
    %216 = vmatprep.subr.mxu0 0.0
    %217 = vmatpush2.xpose.msra.mxu0 0.0
    %218 = vmatprep.subr.mxu0 0.0
    %219 = vmatpush2.xpose.msra.mxu0 0.0
    %220 = vmatprep.subr.mxu0 0.0
    %221 = vmatpush2.xpose.msra.mxu0 0.0
    %222 = vmatprep.subr.mxu0 0.0
    %223 = vmatpush2.xpose.msra.mxu0 0.0
    %224 = vmatprep.subr.mxu0 0.0
    %225 = vmatpush2.xpose.msra.mxu0 0.0
    %226 = vmatprep.subr.mxu0 0.0
    %227 = vmatpush2.xpose.msra.mxu0 0.0
    %228 = vmatprep.subr.mxu0 0.0
    %229 = vmatpush2.xpose.msra.mxu0 0.0
    %230 = vmatprep.subr.mxu0 0.0
    %231 = vmatpush2.xpose.msra.mxu0 0.0
    %232 = vmatprep.subr.mxu0 0.0
    %233 = vmatpush2.xpose.msra.mxu0 0.0
    %234 = vmatprep.mubr.f32.mxu0 0.0
    %235 = vmatmul.mubr.f32.gmra.mxu0 %v165
    %v236 = vpop.f32.mrf.mxu0
    %v237 = vadd.f32 0.0, %v236
    %v238 = vpop.f32.mrf.mxu0
    %239 = vdwg.mxu0
    %v241 = vsel %vm84, %v80, 0
    %v244 = vsel %vm84, %v82, 0
    %246 = vmatprep.subr.mxu0 0.0
    %247 = vmatpush1.xpose.msra.mxu0 0.0
    %248 = vmatprep.subr.mxu0 0.0
    %249 = vmatpush1.xpose.msra.mxu0 0.0
    %250 = vmatprep.subr.mxu0 0.0
    %251 = vmatpush1.xpose.msra.mxu0 0.0
    %252 = vmatprep.subr.mxu0 0.0
    %253 = vmatpush1.xpose.msra.mxu0 0.0
    %254 = vmatprep.subr.mxu0 0.0
    %255 = vmatpush1.xpose.msra.mxu0 0.0
    %256 = vmatprep.subr.mxu0 0.0
    %257 = vmatpush1.xpose.msra.mxu0 0.0
    %258 = vmatprep.subr.mxu0 0.0
    %259 = vmatpush1.xpose.msra.mxu0 0.0
    %260 = vmatprep.subr.mxu0 0.0
    %261 = vmatpush1.xpose.msra.mxu0 0.0
    %262 = vmatprep.subr.mxu0 0.0
    %263 = vmatpush1.xpose.msra.mxu0 0.0
    %264 = vmatprep.subr.mxu0 0.0
    %265 = vmatpush1.xpose.msra.mxu0 0.0
    %266 = vmatprep.subr.mxu0 0.0
    %267 = vmatpush1.xpose.msra.mxu0 0.0
    %268 = vmatprep.subr.mxu0 0.0
    %269 = vmatpush1.xpose.msra.mxu0 0.0
    %270 = vmatprep.subr.mxu0 0.0
    %271 = vmatpush1.xpose.msra.mxu0 0.0
    %272 = vmatprep.subr.mxu0 0.0
    %273 = vmatpush1.xpose.msra.mxu0 0.0
    %274 = vmatprep.subr.mxu0 0.0
    %275 = vmatpush1.xpose.msra.mxu0 0.0
    %276 = vmatprep.subr.mxu0 0.0
    %277 = vmatpush1.xpose.msra.mxu0 %v244
    %278 = vmatprep.subr.mxu0 0.0
    %279 = vmatpush2.xpose.msra.mxu0 0.0
    %280 = vmatprep.subr.mxu0 0.0
    %281 = vmatpush2.xpose.msra.mxu0 0.0
    %282 = vmatprep.subr.mxu0 0.0
    %283 = vmatpush2.xpose.msra.mxu0 0.0
    %284 = vmatprep.subr.mxu0 0.0
    %285 = vmatpush2.xpose.msra.mxu0 0.0
    %286 = vmatprep.subr.mxu0 0.0
    %287 = vmatpush2.xpose.msra.mxu0 0.0
    %288 = vmatprep.subr.mxu0 0.0
    %289 = vmatpush2.xpose.msra.mxu0 0.0
    %290 = vmatprep.subr.mxu0 0.0
    %291 = vmatpush2.xpose.msra.mxu0 0.0
    %292 = vmatprep.subr.mxu0 0.0
    %293 = vmatpush2.xpose.msra.mxu0 0.0
    %294 = vmatprep.subr.mxu0 0.0
    %295 = vmatpush2.xpose.msra.mxu0 0.0
    %296 = vmatprep.subr.mxu0 0.0
    %297 = vmatpush2.xpose.msra.mxu0 0.0
    %298 = vmatprep.subr.mxu0 0.0
    %299 = vmatpush2.xpose.msra.mxu0 0.0
    %300 = vmatprep.subr.mxu0 0.0
    %301 = vmatpush2.xpose.msra.mxu0 0.0
    %302 = vmatprep.subr.mxu0 0.0
    %303 = vmatpush2.xpose.msra.mxu0 0.0
    %304 = vmatprep.subr.mxu0 0.0
    %305 = vmatpush2.xpose.msra.mxu0 0.0
    %306 = vmatprep.subr.mxu0 0.0
    %307 = vmatpush2.xpose.msra.mxu0 0.0
    %308 = vmatprep.subr.mxu0 0.0
    %309 = vmatpush2.xpose.msra.mxu0 0.0
    %310 = vmatprep.mubr.f32.mxu0 0.0
    %311 = vmatmul.mubr.f32.gmra.mxu0 %v241
    %v312 = vpop.f32.mrf.mxu0
    %v313 = vadd.f32 0.0, %v312
    %v314 = vpop.f32.mrf.mxu0
    %315 = vdwg.mxu0
    %316 = vmatprep.subr.mxu0 0.0
    %317 = vmatpush1.xpose.msra.mxu0 0.0
    %318 = vmatprep.subr.mxu0 0.0
    %319 = vmatpush1.xpose.msra.mxu0 0.0
    %320 = vmatprep.subr.mxu0 0.0
    %321 = vmatpush1.xpose.msra.mxu0 0.0
    %322 = vmatprep.subr.mxu0 0.0
    %323 = vmatpush1.xpose.msra.mxu0 0.0
    %324 = vmatprep.subr.mxu0 0.0
    %325 = vmatpush1.xpose.msra.mxu0 0.0
    %326 = vmatprep.subr.mxu0 0.0
    %327 = vmatpush1.xpose.msra.mxu0 0.0
    %328 = vmatprep.subr.mxu0 0.0
    %329 = vmatpush1.xpose.msra.mxu0 0.0
    %330 = vmatprep.subr.mxu0 0.0
    %331 = vmatpush1.xpose.msra.mxu0 0.0
    %332 = vmatprep.subr.mxu0 0.0
    %333 = vmatpush1.xpose.msra.mxu0 0.0
    %334 = vmatprep.subr.mxu0 0.0
    %335 = vmatpush1.xpose.msra.mxu0 0.0
    %336 = vmatprep.subr.mxu0 0.0
    %337 = vmatpush1.xpose.msra.mxu0 0.0
    %338 = vmatprep.subr.mxu0 0.0
    %339 = vmatpush1.xpose.msra.mxu0 0.0
    %340 = vmatprep.subr.mxu0 0.0
    %341 = vmatpush1.xpose.msra.mxu0 0.0
    %342 = vmatprep.subr.mxu0 0.0
    %343 = vmatpush1.xpose.msra.mxu0 0.0
    %344 = vmatprep.subr.mxu0 0.0
    %345 = vmatpush1.xpose.msra.mxu0 0.0
    %346 = vmatprep.subr.mxu0 0.0
    %347 = vmatpush1.xpose.msra.mxu0 %v244
    %348 = vmatprep.subr.mxu0 0.0
    %349 = vmatpush2.xpose.msra.mxu0 0.0
    %350 = vmatprep.subr.mxu0 0.0
    %351 = vmatpush2.xpose.msra.mxu0 0.0
    %352 = vmatprep.subr.mxu0 0.0
    %353 = vmatpush2.xpose.msra.mxu0 0.0
    %354 = vmatprep.subr.mxu0 0.0
    %355 = vmatpush2.xpose.msra.mxu0 0.0
    %356 = vmatprep.subr.mxu0 0.0
    %357 = vmatpush2.xpose.msra.mxu0 0.0
    %358 = vmatprep.subr.mxu0 0.0
    %359 = vmatpush2.xpose.msra.mxu0 0.0
    %360 = vmatprep.subr.mxu0 0.0
    %361 = vmatpush2.xpose.msra.mxu0 0.0
    %362 = vmatprep.subr.mxu0 0.0
    %363 = vmatpush2.xpose.msra.mxu0 0.0
    %364 = vmatprep.subr.mxu0 0.0
    %365 = vmatpush2.xpose.msra.mxu0 0.0
    %366 = vmatprep.subr.mxu0 0.0
    %367 = vmatpush2.xpose.msra.mxu0 0.0
    %368 = vmatprep.subr.mxu0 0.0
    %369 = vmatpush2.xpose.msra.mxu0 0.0
    %370 = vmatprep.subr.mxu0 0.0
    %371 = vmatpush2.xpose.msra.mxu0 0.0
    %372 = vmatprep.subr.mxu0 0.0
    %373 = vmatpush2.xpose.msra.mxu0 0.0
    %374 = vmatprep.subr.mxu0 0.0
    %375 = vmatpush2.xpose.msra.mxu0 0.0
    %376 = vmatprep.subr.mxu0 0.0
    %377 = vmatpush2.xpose.msra.mxu0 0.0
    %378 = vmatprep.subr.mxu0 0.0
    %379 = vmatpush2.xpose.msra.mxu0 0.0
    %380 = vmatprep.mubr.f32.mxu0 0.0
    %381 = vmatmul.mubr.f32.gmra.mxu0 %v165
    %v382 = vpop.f32.mrf.mxu0
    %v383 = vadd.f32 0.0, %v382
    %v384 = vpop.f32.mrf.mxu0
    %385 = vdwg.mxu0
    %v386 = vlaneseq
    %v387 = vshrl.u32 %v386, 7
    %v388 = vsub.s32 0, %v387
    %v389 = vrot.slane %v112, %v388
    %v390 = vadd.f32 %v87, %v389
    %v391 = vmul.f32 %v237, 2.0
    %v392 = vsub.f32 %v390, %v391
    %v393 = vmax.f32 %v392, 0.0
    %v394 = vlaneseq
    %v395 = vshrl.u32 %v394, 7
    %v396 = vsub.s32 0, %v395
    %v397 = vrot.slane %v148, %v396
    %v398 = vadd.f32 %v91, %v397
    %v399 = vmul.f32 %v313, 2.0
    %v400 = vsub.f32 %v398, %v399
    %v401 = vmax.f32 %v400, 0.0
    %v402 = vadd.f32 %v87, %v397
    %v403 = vmul.f32 %v383, 2.0
    %v404 = vsub.f32 %v402, %v403
    %v405 = vmax.f32 %v404, 0.0
    %s406 = sld [smem:[#allocation2 + $0x4]]
    %v407 = vstv %s406
    %v408 = vmul.f32 %v393, %v407
    %v409 = vmul.f32 %v408, 1.442695
    %v410 = vpow.pop %v409
    %vm411 = vcmask 64512
    %v412 = vsel %vm411, %v410, 0.0
    %413 = vadd.xlane.f32.xlu0 %v412
    %v414 = vpop.xlane.xlu0 %413
    %v415 = vrot.slane %v414, 4
    %v416 = vadd.f32 %v414, %v415
    %v417 = vrot.slane %v416, 2
    %v418 = vadd.f32 %v416, %v417
    %v419 = vrot.slane %v418, 1
    %v420 = vadd.f32 %v418, %v419
    %s421 = vtos %v420
    %v422 = vmul.f32 %v410, %v410
    %v423 = vsel %vm411, %v422, 0.0
    %424 = vadd.xlane.f32.xlu0 %v423
    %v425 = vpop.xlane.xlu0 %424
    %v426 = vrot.slane %v425, 4
    %v427 = vadd.f32 %v425, %v426
    %v428 = vrot.slane %v427, 2
    %v429 = vadd.f32 %v427, %v428
    %v430 = vrot.slane %v429, 1
    %v431 = vadd.f32 %v429, %v430
    %s432 = vtos %v431
    %s433 = sadd.f32 %s421, %s432
    %v434 = vmul.f32 %v422, %v422
    %v435 = vsel %vm411, %v434, 0.0
    %436 = vadd.xlane.f32.xlu0 %v435
    %v437 = vpop.xlane.xlu0 %436
    %v438 = vrot.slane %v437, 4
    %v439 = vadd.f32 %v437, %v438
    %v440 = vrot.slane %v439, 2
    %v441 = vadd.f32 %v439, %v440
    %v442 = vrot.slane %v441, 1
    %v443 = vadd.f32 %v441, %v442
    %s444 = vtos %v443
    %s445 = sadd.f32 %s433, %s444
    %v446 = vmul.f32 %v434, %v434
    %v447 = vsel %vm411, %v446, 0.0
    %448 = vadd.xlane.f32.xlu0 %v447
    %v449 = vpop.xlane.xlu0 %448
    %v450 = vrot.slane %v449, 4
    %v451 = vadd.f32 %v449, %v450
    %v452 = vrot.slane %v451, 2
    %v453 = vadd.f32 %v451, %v452
    %v454 = vrot.slane %v453, 1
    %v455 = vadd.f32 %v453, %v454
    %s456 = vtos %v455
    %s457 = sadd.f32 %s445, %s456
    %v458 = vmul.f32 %v446, %v446
    %v459 = vsel %vm411, %v458, 0.0
    %460 = vadd.xlane.f32.xlu0 %v459
    %v461 = vpop.xlane.xlu0 %460
    %v462 = vrot.slane %v461, 4
    %v463 = vadd.f32 %v461, %v462
    %v464 = vrot.slane %v463, 2
    %v465 = vadd.f32 %v463, %v464
    %v466 = vrot.slane %v465, 1
    %v467 = vadd.f32 %v465, %v466
    %s468 = vtos %v467
    %s469 = sadd.f32 %s457, %s468
    %v470 = vmul.f32 %v401, %v407
    %v471 = vmul.f32 %v470, 1.442695
    %v472 = vpow.pop %v471
    %v473 = vsel %vm411, %v472, 0.0
    %474 = vadd.xlane.f32.xlu0 %v473
    %v475 = vpop.xlane.xlu0 %474
    %v476 = vrot.slane %v475, 4
    %v477 = vadd.f32 %v475, %v476
    %v478 = vrot.slane %v477, 2
    %v479 = vadd.f32 %v477, %v478
    %v480 = vrot.slane %v479, 1
    %v481 = vadd.f32 %v479, %v480
    %s482 = vtos %v481
    %v483 = vmul.f32 %v472, %v472
    %v484 = vsel %vm411, %v483, 0.0
    %485 = vadd.xlane.f32.xlu0 %v484
    %v486 = vpop.xlane.xlu0 %485
    %v487 = vrot.slane %v486, 4
    %v488 = vadd.f32 %v486, %v487
    %v489 = vrot.slane %v488, 2
    %v490 = vadd.f32 %v488, %v489
    %v491 = vrot.slane %v490, 1
    %v492 = vadd.f32 %v490, %v491
    %s493 = vtos %v492
    %s494 = sadd.f32 %s482, %s493
    %v495 = vmul.f32 %v483, %v483
    %v496 = vsel %vm411, %v495, 0.0
    %497 = vadd.xlane.f32.xlu0 %v496
    %v498 = vpop.xlane.xlu0 %497
    %v499 = vrot.slane %v498, 4
    %v500 = vadd.f32 %v498, %v499
    %v501 = vrot.slane %v500, 2
    %v502 = vadd.f32 %v500, %v501
    %v503 = vrot.slane %v502, 1
    %v504 = vadd.f32 %v502, %v503
    %s505 = vtos %v504
    %s506 = sadd.f32 %s494, %s505
    %v507 = vmul.f32 %v495, %v495
    %v508 = vsel %vm411, %v507, 0.0
    %509 = vadd.xlane.f32.xlu0 %v508
    %v510 = vpop.xlane.xlu0 %509
    %v511 = vrot.slane %v510, 4
    %v512 = vadd.f32 %v510, %v511
    %v513 = vrot.slane %v512, 2
    %v514 = vadd.f32 %v512, %v513
    %v515 = vrot.slane %v514, 1
    %v516 = vadd.f32 %v514, %v515
    %s517 = vtos %v516
    %s518 = sadd.f32 %s506, %s517
    %v519 = vmul.f32 %v507, %v507
    %v520 = vsel %vm411, %v519, 0.0
    %521 = vadd.xlane.f32.xlu0 %v520
    %v522 = vpop.xlane.xlu0 %521
    %v523 = vrot.slane %v522, 4
    %v524 = vadd.f32 %v522, %v523
    %v525 = vrot.slane %v524, 2
    %v526 = vadd.f32 %v524, %v525
    %v527 = vrot.slane %v526, 1
    %v528 = vadd.f32 %v526, %v527
    %s529 = vtos %v528
    %s530 = sadd.f32 %s518, %s529
    %s531 = sadd.f32 %s469, %s530
    %v532 = vmul.f32 %v405, %v407
    %v533 = vmul.f32 %v532, 1.442695
    %v534 = vpow.pop %v533
    %v535 = vsel %vm411, %v534, 0.0
    %536 = vadd.xlane.f32.xlu0 %v535
    %v537 = vpop.xlane.xlu0 %536
    %v538 = vrot.slane %v537, 4
    %v539 = vadd.f32 %v537, %v538
    %v540 = vrot.slane %v539, 2
    %v541 = vadd.f32 %v539, %v540
    %v542 = vrot.slane %v541, 1
    %v543 = vadd.f32 %v541, %v542
    %s544 = vtos %v543
    %v545 = vmul.f32 %v534, %v534
    %v546 = vsel %vm411, %v545, 0.0
    %547 = vadd.xlane.f32.xlu0 %v546
    %v548 = vpop.xlane.xlu0 %547
    %v549 = vrot.slane %v548, 4
    %v550 = vadd.f32 %v548, %v549
    %v551 = vrot.slane %v550, 2
    %v552 = vadd.f32 %v550, %v551
    %v553 = vrot.slane %v552, 1
    %v554 = vadd.f32 %v552, %v553
    %s555 = vtos %v554
    %s556 = sadd.f32 %s544, %s555
    %v557 = vmul.f32 %v545, %v545
    %v558 = vsel %vm411, %v557, 0.0
    %559 = vadd.xlane.f32.xlu0 %v558
    %v560 = vpop.xlane.xlu0 %559
    %v561 = vrot.slane %v560, 4
    %v562 = vadd.f32 %v560, %v561
    %v563 = vrot.slane %v562, 2
    %v564 = vadd.f32 %v562, %v563
    %v565 = vrot.slane %v564, 1
    %v566 = vadd.f32 %v564, %v565
    %s567 = vtos %v566
    %s568 = sadd.f32 %s556, %s567
    %v569 = vmul.f32 %v557, %v557
    %v570 = vsel %vm411, %v569, 0.0
    %571 = vadd.xlane.f32.xlu0 %v570
    %v572 = vpop.xlane.xlu0 %571
    %v573 = vrot.slane %v572, 4
    %v574 = vadd.f32 %v572, %v573
    %v575 = vrot.slane %v574, 2
    %v576 = vadd.f32 %v574, %v575
    %v577 = vrot.slane %v576, 1
    %v578 = vadd.f32 %v576, %v577
    %s579 = vtos %v578
    %s580 = sadd.f32 %s568, %s579
    %v581 = vmul.f32 %v569, %v569
    %v582 = vsel %vm411, %v581, 0.0
    %583 = vadd.xlane.f32.xlu0 %v582
    %v584 = vpop.xlane.xlu0 %583
    %v585 = vrot.slane %v584, 4
    %v586 = vadd.f32 %v584, %v585
    %v587 = vrot.slane %v586, 2
    %v588 = vadd.f32 %v586, %v587
    %v589 = vrot.slane %v588, 1
    %v590 = vadd.f32 %v588, %v589
    %s591 = vtos %v590
    %s592 = sadd.f32 %s580, %s591
    %s593 = smul.f32 %s592, 2.0
    %s594 = ssub.f32 %s531, %s593
    %p595 = scmp.eq.s32.totalorder 0, 0
    // Predicated region
    $region42: #{tpu_custom_call.1} parent=1 // pred_check
      %p596 = pneg %p595
    $region43: #{tpu_custom_call.1} parent=1 // pred_check_branch
      %598 = sbr.rel (%p596) target = $region45
    $region44: #{tpu_custom_call.1} parent=1 // pred_region
      %s599 = scalar_lea.smem [#allocation12], 0
      %600 = sst [smem:[%s599]] 0.0
    $region45: #{tpu_custom_call.1} parent=1 // pred_fallthru
      _
    %s601 = sld [smem:[#allocation12]]
    %s602 = sadd.f32 %s601, %s594
    %s603 = scalar_lea.smem [#allocation12], 0
    %604 = sst [smem:[%s603]] %s602
    // Predicated region
    $region46: #{tpu_custom_call.1} parent=1 // pred_check
      _
    $region47: #{tpu_custom_call.1} parent=1 // pred_check_branch
      %606 = sbr.rel (0) target = $region49
    $region48: #{tpu_custom_call.1} parent=1 // pred_region
      %s608 = ssub.s32 16, 16
      %609 = vsyncadd [#allocation5], %s608
      %612 = dma.smem_to_hbm [#allocation12], 16, %s5, [#allocation5]
    $region49: #{tpu_custom_call.1} parent=1 // pred_fallthru
      _
    // Predicated region
    $region50: #{tpu_custom_call.1} parent=1 // pred_check
      _
    $region51: #{tpu_custom_call.1} parent=1 // pred_check_branch
      %614 = sbr.rel (0) target = $region53
    $region52: #{tpu_custom_call.1} parent=1 // pred_region
      %615 = dma.done [#allocation5], 16
    $region53: #{tpu_custom_call.1} parent=1 // pred_fallthru
      _
    %616 = sfence
    %617 = vsyncpa [#allocation3], 1
    %618 = vsyncpa [#allocation8], 1
    %619 = vsyncpa [#allocation11], 1
    %620 = vsyncpa [#allocation4], 1
    %621 = vsyncpa [#allocation5], 1

</llo_original>
